<compile_context>
chip_gen: v5e
topology: v5e:2x2
jax: 0.10.0
libtpu: 0.0.40
codegen_flags: <defaults>
</compile_context>

<pallas_src>
import jax
import jax.numpy as jnp
from jax import lax
from jax.experimental import pallas as pl
from jax.experimental.pallas import tpu as pltpu

# ---- model sizes (small, consistent with the module's forward) ----
N_CLASS = 26    # vocab / one-hot size (input_size and output size)
N_HIDDEN = 32   # LSTM hidden size
BATCH = 2
SEQ = 8


def _lstm_kernel(x_ref, wih_t_ref, whh_t_ref, bias_ref, wout_t_ref, bout_ref, o_ref):
    """Full LSTM recurrence + final linear inside the kernel.

    x_ref     : (SEQ*BATCH, N_CLASS)   time-major, flattened (t*BATCH + b rows)
    wih_t_ref : (N_CLASS, 4*N_HIDDEN)  (W_ih.T)
    whh_t_ref : (N_HIDDEN, 4*N_HIDDEN) (W_hh.T)
    bias_ref  : (1, 4*N_HIDDEN)        (b_ih + b_hh, folded on host)
    wout_t_ref: (N_HIDDEN, N_CLASS)    (W.T)
    bout_ref  : (1, N_CLASS)
    o_ref     : (BATCH, N_CLASS)
    """
    H = N_HIDDEN
    B = BATCH

    # One MXU call covering the input projection of ALL timesteps, hoisted out
    # of the serial recurrence; combined bias folded in here once.
    xg = (jnp.dot(x_ref[...], wih_t_ref[...],
                  preferred_element_type=jnp.float32)
          + bias_ref[...])                                      # (SEQ*BATCH, 4H)

    whh_t = whh_t_ref[...]                                      # (H, 4H)

    # h / c are 2x32 f32 each -> kept in vregs, never round-tripped through VMEM.
    h = jnp.zeros((B, H), jnp.float32)
    c = jnp.zeros((B, H), jnp.float32)

    # SEQ is a compile-time constant -> fully unrolled recurrence; only one MXU
    # matmul (h @ W_hh.T) remains on the serial chain per step.
    for t in range(SEQ):
        gates = xg[t * B:(t + 1) * B, :] + jnp.dot(
            h, whh_t, preferred_element_type=jnp.float32)       # (B, 4H) = 1 vreg wide

        # Two full-vreg EUP transcendentals instead of four sub-vreg ones.
        sig = jax.nn.sigmoid(gates)
        th = jnp.tanh(gates)

        # PyTorch gate order: input, forget, cell(g), output.
        i_g = sig[:, 0 * H:1 * H]
        f_g = sig[:, 1 * H:2 * H]
        g_g = th[:, 2 * H:3 * H]
        o_g = sig[:, 3 * H:4 * H]

        c = f_g * c + i_g * g_g
        h = o_g * jnp.tanh(c)

    # model = W(outputs[-1]) + b
    # (output is lane-width 26 -> one masked vst; padding to 128 lanes is not
    #  worth it for a single store at this call frequency.)
    o_ref[...] = (jnp.dot(h, wout_t_ref[...],
                          preferred_element_type=jnp.float32)
                  + bout_ref[...])


def text_lstm_forward(X, params):
    """X: (BATCH, SEQ, N_CLASS) float32 -> (BATCH, N_CLASS) float32."""
    W_ih, W_hh, b_ih, b_hh, W_out, b_out = params
    B, S, C = X.shape

    # Layout plumbing only: time-major then flatten so the kernel does a single
    # dense (S*B, C) x (C, 4H) input-projection matmul.
    x_flat = jnp.transpose(X, (1, 0, 2)).reshape(S * B, C).astype(jnp.float32)
    bias = (b_ih + b_hh).reshape(1, -1)                         # fold the two LSTM biases

    return pl.pallas_call(
        _lstm_kernel,
        out_shape=jax.ShapeDtypeStruct((B, N_CLASS), jnp.float32),
        in_specs=[pl.BlockSpec(memory_space=pltpu.MemorySpace.VMEM)] * 6,
        out_specs=pl.BlockSpec(memory_space=pltpu.MemorySpace.VMEM),
    )(
        x_flat,                         # (SEQ*BATCH, N_CLASS)
        W_ih.T,                         # (N_CLASS, 4H)
        W_hh.T,                         # (N_HIDDEN, 4H)
        bias,                           # (1, 4H)
        W_out.T,                        # (N_HIDDEN, N_CLASS)
        b_out.reshape(1, -1),           # (1, N_CLASS)
    )


def ref_forward(X, params):
    """Pure-JAX reference matching torch.nn.LSTM + Linear(bias=False) + b."""
    W_ih, W_hh, b_ih, b_hh, W_out, b_out = params
    xs = jnp.transpose(X, (1, 0, 2))                  # (SEQ, BATCH, N_CLASS)
    H = N_HIDDEN

    def step(carry, x_t):
        h, c = carry
        gates = x_t @ W_ih.T + h @ W_hh.T + b_ih + b_hh
        i_g = jax.nn.sigmoid(gates[:, 0 * H:1 * H])
        f_g = jax.nn.sigmoid(gates[:, 1 * H:2 * H])
        g_g = jnp.tanh(gates[:, 2 * H:3 * H])
        o_g = jax.nn.sigmoid(gates[:, 3 * H:4 * H])
        c = f_g * c + i_g * g_g
        h = o_g * jnp.tanh(c)
        return (h, c), None

    h0 = jnp.zeros((X.shape[0], H), jnp.float32)
    c0 = jnp.zeros((X.shape[0], H), jnp.float32)
    (h_last, _), _ = lax.scan(step, (h0, c0), xs)
    return h_last @ W_out.T + b_out


def init_params(key):
    k = 1.0 / jnp.sqrt(jnp.float32(N_HIDDEN))
    ks = jax.random.split(key, 5)
    W_ih = jax.random.uniform(ks[0], (4 * N_HIDDEN, N_CLASS), jnp.float32, -k, k)
    W_hh = jax.random.uniform(ks[1], (4 * N_HIDDEN, N_HIDDEN), jnp.float32, -k, k)
    b_ih = jax.random.uniform(ks[2], (4 * N_HIDDEN,), jnp.float32, -k, k)
    b_hh = jax.random.uniform(ks[3], (4 * N_HIDDEN,), jnp.float32, -k, k)
    W_out = jax.random.uniform(ks[4], (N_CLASS, N_HIDDEN), jnp.float32, -k, k)
    b_out = jnp.ones((N_CLASS,), jnp.float32)         # nn.Parameter(torch.ones([n_class]))
    return (W_ih, W_hh, b_ih, b_hh, W_out, b_out)


if __name__ == "__main__":
    key = jax.random.PRNGKey(0)
    k_x, k_p = jax.random.split(key)
    X = jax.random.normal(k_x, (BATCH, SEQ, N_CLASS), jnp.float32)
    params = init_params(k_p)

    out = text_lstm_forward(X, params)
    out = jax.block_until_ready(out)

    ref = ref_forward(X, params)
    assert out.shape == (BATCH, N_CLASS)
    assert jnp.allclose(out, ref, atol=1e-4, rtol=1e-4), "mismatch vs reference"
    print("KERNEL_OK")
</pallas_src>

<mosaic_0001>
module attributes {stable_mosaic.version = 11 : i64} {
  func.func @_lstm_kernel(%arg0: memref<16x26xf32, #tpu.memory_space<vmem>>, %arg1: memref<26x128xf32, #tpu.memory_space<vmem>>, %arg2: memref<32x128xf32, #tpu.memory_space<vmem>>, %arg3: memref<1x128xf32, #tpu.memory_space<vmem>>, %arg4: memref<32x26xf32, #tpu.memory_space<vmem>>, %arg5: memref<1x26xf32, #tpu.memory_space<vmem>>, %arg6: memref<2x26xf32, #tpu.memory_space<vmem>>) attributes {dimension_semantics = [], scalar_prefetch = 0 : i64, scratch_operands = 0 : i64, tpu.core_type = #tpu.core_type<tc>} {
    %c0 = arith.constant 0 : index
    %c0_0 = arith.constant 0 : index
    %0 = vector.load %arg0[%c0, %c0_0] : memref<16x26xf32, #tpu.memory_space<vmem>>, vector<16x26xf32>
    %c0_1 = arith.constant 0 : index
    %c0_2 = arith.constant 0 : index
    %1 = vector.load %arg1[%c0_1, %c0_2] : memref<26x128xf32, #tpu.memory_space<vmem>>, vector<26x128xf32>
    %cst = arith.constant dense<0.000000e+00> : vector<16x128xf32>
    %2 = tpu.matmul %0, %1, %cst {dimension_numbers = #tpu.dot_dimension_numbers<[1], [0], [0], [1], [0, 0, 1, 1], [], []>} : vector<16x26xf32>, vector<26x128xf32>, vector<16x128xf32> -> vector<16x128xf32>
    %c0_3 = arith.constant 0 : index
    %c0_4 = arith.constant 0 : index
    %3 = vector.load %arg3[%c0_3, %c0_4] : memref<1x128xf32, #tpu.memory_space<vmem>>, vector<1x128xf32>
    %4 = vector.broadcast %3 : vector<1x128xf32> to vector<16x128xf32>
    %5 = arith.addf %2, %4 : vector<16x128xf32>
    %c0_5 = arith.constant 0 : index
    %c0_6 = arith.constant 0 : index
    %6 = vector.load %arg2[%c0_5, %c0_6] : memref<32x128xf32, #tpu.memory_space<vmem>>, vector<32x128xf32>
    %cst_7 = arith.constant 0.000000e+00 : f32
    %7 = vector.broadcast %cst_7 : f32 to vector<2x32xf32>
    %cst_8 = arith.constant 0.000000e+00 : f32
    %8 = vector.broadcast %cst_8 : f32 to vector<2x32xf32>
    %9 = vector.extract_strided_slice %5 {offsets = [0, 0], sizes = [2, 128], strides = [1, 1]} : vector<16x128xf32> to vector<2x128xf32>
    %cst_9 = arith.constant dense<0.000000e+00> : vector<2x128xf32>
    %10 = tpu.matmul %7, %6, %cst_9 {dimension_numbers = #tpu.dot_dimension_numbers<[1], [0], [0], [1], [0, 0, 1, 1], [], []>} : vector<2x32xf32>, vector<32x128xf32>, vector<2x128xf32> -> vector<2x128xf32>
    %11 = arith.addf %9, %10 : vector<2x128xf32>
    %12 = arith.negf %11 : vector<2x128xf32>
    %13 = math.exp %12 : vector<2x128xf32>
    %cst_10 = arith.constant 1.000000e+00 : f32
    %14 = vector.broadcast %cst_10 : f32 to vector<2x128xf32>
    %15 = arith.addf %14, %13 : vector<2x128xf32>
    %16 = arith.divf %14, %15 : vector<2x128xf32>
    %17 = math.tanh %11 : vector<2x128xf32>
    %18 = vector.extract_strided_slice %16 {offsets = [0, 0], sizes = [2, 32], strides = [1, 1]} : vector<2x128xf32> to vector<2x32xf32>
    %19 = vector.extract_strided_slice %16 {offsets = [0, 32], sizes = [2, 32], strides = [1, 1]} : vector<2x128xf32> to vector<2x32xf32>
    %20 = vector.extract_strided_slice %17 {offsets = [0, 64], sizes = [2, 32], strides = [1, 1]} : vector<2x128xf32> to vector<2x32xf32>
    %21 = vector.extract_strided_slice %16 {offsets = [0, 96], sizes = [2, 32], strides = [1, 1]} : vector<2x128xf32> to vector<2x32xf32>
    %22 = arith.mulf %19, %8 : vector<2x32xf32>
    %23 = arith.mulf %18, %20 : vector<2x32xf32>
    %24 = arith.addf %22, %23 : vector<2x32xf32>
    %25 = math.tanh %24 : vector<2x32xf32>
    %26 = arith.mulf %21, %25 : vector<2x32xf32>
    %27 = vector.extract_strided_slice %5 {offsets = [2, 0], sizes = [2, 128], strides = [1, 1]} : vector<16x128xf32> to vector<2x128xf32>
    %cst_11 = arith.constant dense<0.000000e+00> : vector<2x128xf32>
    %28 = tpu.matmul %26, %6, %cst_11 {dimension_numbers = #tpu.dot_dimension_numbers<[1], [0], [0], [1], [0, 0, 1, 1], [], []>} : vector<2x32xf32>, vector<32x128xf32>, vector<2x128xf32> -> vector<2x128xf32>
    %29 = arith.addf %27, %28 : vector<2x128xf32>
    %30 = arith.negf %29 : vector<2x128xf32>
    %31 = math.exp %30 : vector<2x128xf32>
    %cst_12 = arith.constant 1.000000e+00 : f32
    %32 = vector.broadcast %cst_12 : f32 to vector<2x128xf32>
    %33 = arith.addf %32, %31 : vector<2x128xf32>
    %34 = arith.divf %32, %33 : vector<2x128xf32>
    %35 = math.tanh %29 : vector<2x128xf32>
    %36 = vector.extract_strided_slice %34 {offsets = [0, 0], sizes = [2, 32], strides = [1, 1]} : vector<2x128xf32> to vector<2x32xf32>
    %37 = vector.extract_strided_slice %34 {offsets = [0, 32], sizes = [2, 32], strides = [1, 1]} : vector<2x128xf32> to vector<2x32xf32>
    %38 = vector.extract_strided_slice %35 {offsets = [0, 64], sizes = [2, 32], strides = [1, 1]} : vector<2x128xf32> to vector<2x32xf32>
    %39 = vector.extract_strided_slice %34 {offsets = [0, 96], sizes = [2, 32], strides = [1, 1]} : vector<2x128xf32> to vector<2x32xf32>
    %40 = arith.mulf %37, %24 : vector<2x32xf32>
    %41 = arith.mulf %36, %38 : vector<2x32xf32>
    %42 = arith.addf %40, %41 : vector<2x32xf32>
    %43 = math.tanh %42 : vector<2x32xf32>
    %44 = arith.mulf %39, %43 : vector<2x32xf32>
    %45 = vector.extract_strided_slice %5 {offsets = [4, 0], sizes = [2, 128], strides = [1, 1]} : vector<16x128xf32> to vector<2x128xf32>
    %cst_13 = arith.constant dense<0.000000e+00> : vector<2x128xf32>
    %46 = tpu.matmul %44, %6, %cst_13 {dimension_numbers = #tpu.dot_dimension_numbers<[1], [0], [0], [1], [0, 0, 1, 1], [], []>} : vector<2x32xf32>, vector<32x128xf32>, vector<2x128xf32> -> vector<2x128xf32>
    %47 = arith.addf %45, %46 : vector<2x128xf32>
    %48 = arith.negf %47 : vector<2x128xf32>
    %49 = math.exp %48 : vector<2x128xf32>
    %cst_14 = arith.constant 1.000000e+00 : f32
    %50 = vector.broadcast %cst_14 : f32 to vector<2x128xf32>
    %51 = arith.addf %50, %49 : vector<2x128xf32>
    %52 = arith.divf %50, %51 : vector<2x128xf32>
    %53 = math.tanh %47 : vector<2x128xf32>
    %54 = vector.extract_strided_slice %52 {offsets = [0, 0], sizes = [2, 32], strides = [1, 1]} : vector<2x128xf32> to vector<2x32xf32>
    %55 = vector.extract_strided_slice %52 {offsets = [0, 32], sizes = [2, 32], strides = [1, 1]} : vector<2x128xf32> to vector<2x32xf32>
    %56 = vector.extract_strided_slice %53 {offsets = [0, 64], sizes = [2, 32], strides = [1, 1]} : vector<2x128xf32> to vector<2x32xf32>
    %57 = vector.extract_strided_slice %52 {offsets = [0, 96], sizes = [2, 32], strides = [1, 1]} : vector<2x128xf32> to vector<2x32xf32>
    %58 = arith.mulf %55, %42 : vector<2x32xf32>
    %59 = arith.mulf %54, %56 : vector<2x32xf32>
    %60 = arith.addf %58, %59 : vector<2x32xf32>
    %61 = math.tanh %60 : vector<2x32xf32>
    %62 = arith.mulf %57, %61 : vector<2x32xf32>
    %63 = vector.extract_strided_slice %5 {offsets = [6, 0], sizes = [2, 128], strides = [1, 1]} : vector<16x128xf32> to vector<2x128xf32>
    %cst_15 = arith.constant dense<0.000000e+00> : vector<2x128xf32>
    %64 = tpu.matmul %62, %6, %cst_15 {dimension_numbers = #tpu.dot_dimension_numbers<[1], [0], [0], [1], [0, 0, 1, 1], [], []>} : vector<2x32xf32>, vector<32x128xf32>, vector<2x128xf32> -> vector<2x128xf32>
    %65 = arith.addf %63, %64 : vector<2x128xf32>
    %66 = arith.negf %65 : vector<2x128xf32>
    %67 = math.exp %66 : vector<2x128xf32>
    %cst_16 = arith.constant 1.000000e+00 : f32
    %68 = vector.broadcast %cst_16 : f32 to vector<2x128xf32>
    %69 = arith.addf %68, %67 : vector<2x128xf32>
    %70 = arith.divf %68, %69 : vector<2x128xf32>
    %71 = math.tanh %65 : vector<2x128xf32>
    %72 = vector.extract_strided_slice %70 {offsets = [0, 0], sizes = [2, 32], strides = [1, 1]} : vector<2x128xf32> to vector<2x32xf32>
    %73 = vector.extract_strided_slice %70 {offsets = [0, 32], sizes = [2, 32], strides = [1, 1]} : vector<2x128xf32> to vector<2x32xf32>
    %74 = vector.extract_strided_slice %71 {offsets = [0, 64], sizes = [2, 32], strides = [1, 1]} : vector<2x128xf32> to vector<2x32xf32>
    %75 = vector.extract_strided_slice %70 {offsets = [0, 96], sizes = [2, 32], strides = [1, 1]} : vector<2x128xf32> to vector<2x32xf32>
    %76 = arith.mulf %73, %60 : vector<2x32xf32>
    %77 = arith.mulf %72, %74 : vector<2x32xf32>
    %78 = arith.addf %76, %77 : vector<2x32xf32>
    %79 = math.tanh %78 : vector<2x32xf32>
    %80 = arith.mulf %75, %79 : vector<2x32xf32>
    %81 = vector.extract_strided_slice %5 {offsets = [8, 0], sizes = [2, 128], strides = [1, 1]} : vector<16x128xf32> to vector<2x128xf32>
    %cst_17 = arith.constant dense<0.000000e+00> : vector<2x128xf32>
    %82 = tpu.matmul %80, %6, %cst_17 {dimension_numbers = #tpu.dot_dimension_numbers<[1], [0], [0], [1], [0, 0, 1, 1], [], []>} : vector<2x32xf32>, vector<32x128xf32>, vector<2x128xf32> -> vector<2x128xf32>
    %83 = arith.addf %81, %82 : vector<2x128xf32>
    %84 = arith.negf %83 : vector<2x128xf32>
    %85 = math.exp %84 : vector<2x128xf32>
    %cst_18 = arith.constant 1.000000e+00 : f32
    %86 = vector.broadcast %cst_18 : f32 to vector<2x128xf32>
    %87 = arith.addf %86, %85 : vector<2x128xf32>
    %88 = arith.divf %86, %87 : vector<2x128xf32>
    %89 = math.tanh %83 : vector<2x128xf32>
    %90 = vector.extract_strided_slice %88 {offsets = [0, 0], sizes = [2, 32], strides = [1, 1]} : vector<2x128xf32> to vector<2x32xf32>
    %91 = vector.extract_strided_slice %88 {offsets = [0, 32], sizes = [2, 32], strides = [1, 1]} : vector<2x128xf32> to vector<2x32xf32>
    %92 = vector.extract_strided_slice %89 {offsets = [0, 64], sizes = [2, 32], strides = [1, 1]} : vector<2x128xf32> to vector<2x32xf32>
    %93 = vector.extract_strided_slice %88 {offsets = [0, 96], sizes = [2, 32], strides = [1, 1]} : vector<2x128xf32> to vector<2x32xf32>
    %94 = arith.mulf %91, %78 : vector<2x32xf32>
    %95 = arith.mulf %90, %92 : vector<2x32xf32>
    %96 = arith.addf %94, %95 : vector<2x32xf32>
    %97 = math.tanh %96 : vector<2x32xf32>
    %98 = arith.mulf %93, %97 : vector<2x32xf32>
    %99 = vector.extract_strided_slice %5 {offsets = [10, 0], sizes = [2, 128], strides = [1, 1]} : vector<16x128xf32> to vector<2x128xf32>
    %cst_19 = arith.constant dense<0.000000e+00> : vector<2x128xf32>
    %100 = tpu.matmul %98, %6, %cst_19 {dimension_numbers = #tpu.dot_dimension_numbers<[1], [0], [0], [1], [0, 0, 1, 1], [], []>} : vector<2x32xf32>, vector<32x128xf32>, vector<2x128xf32> -> vector<2x128xf32>
    %101 = arith.addf %99, %100 : vector<2x128xf32>
    %102 = arith.negf %101 : vector<2x128xf32>
    %103 = math.exp %102 : vector<2x128xf32>
    %cst_20 = arith.constant 1.000000e+00 : f32
    %104 = vector.broadcast %cst_20 : f32 to vector<2x128xf32>
    %105 = arith.addf %104, %103 : vector<2x128xf32>
    %106 = arith.divf %104, %105 : vector<2x128xf32>
    %107 = math.tanh %101 : vector<2x128xf32>
    %108 = vector.extract_strided_slice %106 {offsets = [0, 0], sizes = [2, 32], strides = [1, 1]} : vector<2x128xf32> to vector<2x32xf32>
    %109 = vector.extract_strided_slice %106 {offsets = [0, 32], sizes = [2, 32], strides = [1, 1]} : vector<2x128xf32> to vector<2x32xf32>
    %110 = vector.extract_strided_slice %107 {offsets = [0, 64], sizes = [2, 32], strides = [1, 1]} : vector<2x128xf32> to vector<2x32xf32>
    %111 = vector.extract_strided_slice %106 {offsets = [0, 96], sizes = [2, 32], strides = [1, 1]} : vector<2x128xf32> to vector<2x32xf32>
    %112 = arith.mulf %109, %96 : vector<2x32xf32>
    %113 = arith.mulf %108, %110 : vector<2x32xf32>
    %114 = arith.addf %112, %113 : vector<2x32xf32>
    %115 = math.tanh %114 : vector<2x32xf32>
    %116 = arith.mulf %111, %115 : vector<2x32xf32>
    %117 = vector.extract_strided_slice %5 {offsets = [12, 0], sizes = [2, 128], strides = [1, 1]} : vector<16x128xf32> to vector<2x128xf32>
    %cst_21 = arith.constant dense<0.000000e+00> : vector<2x128xf32>
    %118 = tpu.matmul %116, %6, %cst_21 {dimension_numbers = #tpu.dot_dimension_numbers<[1], [0], [0], [1], [0, 0, 1, 1], [], []>} : vector<2x32xf32>, vector<32x128xf32>, vector<2x128xf32> -> vector<2x128xf32>
    %119 = arith.addf %117, %118 : vector<2x128xf32>
    %120 = arith.negf %119 : vector<2x128xf32>
    %121 = math.exp %120 : vector<2x128xf32>
    %cst_22 = arith.constant 1.000000e+00 : f32
    %122 = vector.broadcast %cst_22 : f32 to vector<2x128xf32>
    %123 = arith.addf %122, %121 : vector<2x128xf32>
    %124 = arith.divf %122, %123 : vector<2x128xf32>
    %125 = math.tanh %119 : vector<2x128xf32>
    %126 = vector.extract_strided_slice %124 {offsets = [0, 0], sizes = [2, 32], strides = [1, 1]} : vector<2x128xf32> to vector<2x32xf32>
    %127 = vector.extract_strided_slice %124 {offsets = [0, 32], sizes = [2, 32], strides = [1, 1]} : vector<2x128xf32> to vector<2x32xf32>
    %128 = vector.extract_strided_slice %125 {offsets = [0, 64], sizes = [2, 32], strides = [1, 1]} : vector<2x128xf32> to vector<2x32xf32>
    %129 = vector.extract_strided_slice %124 {offsets = [0, 96], sizes = [2, 32], strides = [1, 1]} : vector<2x128xf32> to vector<2x32xf32>
    %130 = arith.mulf %127, %114 : vector<2x32xf32>
    %131 = arith.mulf %126, %128 : vector<2x32xf32>
    %132 = arith.addf %130, %131 : vector<2x32xf32>
    %133 = math.tanh %132 : vector<2x32xf32>
    %134 = arith.mulf %129, %133 : vector<2x32xf32>
    %135 = vector.extract_strided_slice %5 {offsets = [14, 0], sizes = [2, 128], strides = [1, 1]} : vector<16x128xf32> to vector<2x128xf32>
    %cst_23 = arith.constant dense<0.000000e+00> : vector<2x128xf32>
    %136 = tpu.matmul %134, %6, %cst_23 {dimension_numbers = #tpu.dot_dimension_numbers<[1], [0], [0], [1], [0, 0, 1, 1], [], []>} : vector<2x32xf32>, vector<32x128xf32>, vector<2x128xf32> -> vector<2x128xf32>
    %137 = arith.addf %135, %136 : vector<2x128xf32>
    %138 = arith.negf %137 : vector<2x128xf32>
    %139 = math.exp %138 : vector<2x128xf32>
    %cst_24 = arith.constant 1.000000e+00 : f32
    %140 = vector.broadcast %cst_24 : f32 to vector<2x128xf32>
    %141 = arith.addf %140, %139 : vector<2x128xf32>
    %142 = arith.divf %140, %141 : vector<2x128xf32>
    %143 = math.tanh %137 : vector<2x128xf32>
    %144 = vector.extract_strided_slice %142 {offsets = [0, 0], sizes = [2, 32], strides = [1, 1]} : vector<2x128xf32> to vector<2x32xf32>
    %145 = vector.extract_strided_slice %142 {offsets = [0, 32], sizes = [2, 32], strides = [1, 1]} : vector<2x128xf32> to vector<2x32xf32>
    %146 = vector.extract_strided_slice %143 {offsets = [0, 64], sizes = [2, 32], strides = [1, 1]} : vector<2x128xf32> to vector<2x32xf32>
    %147 = vector.extract_strided_slice %142 {offsets = [0, 96], sizes = [2, 32], strides = [1, 1]} : vector<2x128xf32> to vector<2x32xf32>
    %148 = arith.mulf %145, %132 : vector<2x32xf32>
    %149 = arith.mulf %144, %146 : vector<2x32xf32>
    %150 = arith.addf %148, %149 : vector<2x32xf32>
    %151 = math.tanh %150 : vector<2x32xf32>
    %152 = arith.mulf %147, %151 : vector<2x32xf32>
    %c0_25 = arith.constant 0 : index
    %c0_26 = arith.constant 0 : index
    %153 = vector.load %arg4[%c0_25, %c0_26] : memref<32x26xf32, #tpu.memory_space<vmem>>, vector<32x26xf32>
    %cst_27 = arith.constant dense<0.000000e+00> : vector<2x26xf32>
    %154 = tpu.matmul %152, %153, %cst_27 {dimension_numbers = #tpu.dot_dimension_numbers<[1], [0], [0], [1], [0, 0, 1, 1], [], []>} : vector<2x32xf32>, vector<32x26xf32>, vector<2x26xf32> -> vector<2x26xf32>
    %c0_28 = arith.constant 0 : index
    %c0_29 = arith.constant 0 : index
    %155 = vector.load %arg5[%c0_28, %c0_29] : memref<1x26xf32, #tpu.memory_space<vmem>>, vector<1x26xf32>
    %156 = vector.broadcast %155 : vector<1x26xf32> to vector<2x26xf32>
    %157 = arith.addf %154, %156 : vector<2x26xf32>
    %c0_30 = arith.constant 0 : index
    %c0_31 = arith.constant 0 : index
    %158 = vector.load %arg6[%c0_30, %c0_31] : memref<2x26xf32, #tpu.memory_space<vmem>>, vector<2x26xf32>
    tpu.vector_store %arg6[%c0_30, %c0_31], %157 {strides = array<i32>} : memref<2x26xf32, #tpu.memory_space<vmem>>, vector<2x26xf32>,
    return
  }
}

</mosaic_0001>

<llo_original>
// kernel: tpu_custom_call.1
$region0: #{tpu_custom_call.1}
  #allocation0 [shape = 'u32[]', space=smem, size = 0x4, offset = 0x4, fixed_abs, tag = 'smem constant byte address 0x4 - core index']
  #allocation1 [shape = 'u32[72,128]{1,0:T(1,128)}', space=vmem, size = 0x9000, scoped, tag = 'internal scratch']
  %s0 = inlined_call_operand.hbm [shape: f32[16,26], index: 0, kind: input, shape index: {}]
  %s1 = inlined_call_operand.hbm [shape: f32[26,128], index: 1, kind: input, shape index: {}]
  %s2 = inlined_call_operand.hbm [shape: f32[32,128], index: 2, kind: input, shape index: {}]
  %s3 = inlined_call_operand.vmem [shape: f32[1,128], index: 3, kind: input, shape index: {}]
  %s4 = inlined_call_operand.hbm [shape: f32[32,26], index: 4, kind: input, shape index: {}]
  %s5 = inlined_call_operand.vmem [shape: f32[1,26], index: 5, kind: input, shape index: {}]
  %s6 = inlined_call_operand.hbm [shape: f32[2,26], index: 6, kind: output, shape index: {}]
  %s7 = sld [smem:[#allocation0]]
  $region50: #{tpu_custom_call.1} parent=0
    _
  %s9 = ssub.s32 1, %s7
  %s10 = scalar_select 0, %s9, %s7
  $region1: #{tpu_custom_call.1} parent=0
    #allocation2 [shape = 'u8[8192]{0}', space=vmem, size = 0x2000, scoped, tag = 'input window, operand 0, single buffered']
    #allocation3 [shape = 's32[1]{0}', space=sflag, size = 0x4, scoped, tag = 'scoped memory for tpu_custom_call.1']
    #allocation4 [shape = 's32[1]{0}', space=sflag, size = 0x4, scoped, tag = 'scoped memory for tpu_custom_call.1']
    #allocation5 [shape = 'u8[16384]{0}', space=vmem, size = 0x4000, scoped, tag = 'input window, operand 1, single buffered']
    #allocation6 [shape = 's32[1]{0}', space=sflag, size = 0x4, scoped, tag = 'scoped memory for tpu_custom_call.1']
    #allocation7 [shape = 'u8[16384]{0}', space=vmem, size = 0x4000, scoped, tag = 'input window, operand 2, single buffered']
    #allocation8 [shape = 'u8[16384]{0}', space=vmem, size = 0x4000, scoped, tag = 'input window, operand 4, single buffered']
    #allocation9 [shape = 's32[1]{0}', space=sflag, size = 0x4, scoped, tag = 'scoped memory for tpu_custom_call.1']
    #allocation10 [shape = 'u8[1024]{0}', space=vmem, size = 0x400, scoped, tag = 'output window, operand 0, single buffered']
    %11 = vsyncpa [#allocation3], 0
    %12 = vsyncpa [#allocation6], 0
    %13 = vsyncpa [#allocation9], 0
    %14 = vsyncpa [#allocation4], 0
    // Predicated region
    $region2: #{tpu_custom_call.1} parent=1 // pred_check
      _
    $region3: #{tpu_custom_call.1} parent=1 // pred_check_branch
      %16 = sbr.rel (0) target = $region5
    $region4: #{tpu_custom_call.1} parent=1 // pred_region
      %18 = vsyncadd [#allocation3], 0
      %s19 = sshll.u32 %s0, 4
      %s20 = int_to_ptr.hbm [resolvable:$true] %s19
      %s21 = sshll.u32 [#allocation2], 4
      %s22 = int_to_ptr.vmem [resolvable:$true] %s21
      %27 = dma.hbm_to_vmem [thread:$0]  %s20, 256, %s22, [#allocation3], 128, 128, 8
    $region5: #{tpu_custom_call.1} parent=1 // pred_fallthru
      _
    // Predicated region
    $region6: #{tpu_custom_call.1} parent=1 // pred_check
      _
    $region7: #{tpu_custom_call.1} parent=1 // pred_check_branch
      %29 = sbr.rel (0) target = $region9
    $region8: #{tpu_custom_call.1} parent=1 // pred_region
      %31 = vsyncadd [#allocation6], 0
      %s32 = sshll.u32 %s1, 4
      %s33 = int_to_ptr.hbm [resolvable:$true] %s32
      %s34 = sshll.u32 [#allocation5], 4
      %s35 = int_to_ptr.vmem [resolvable:$true] %s34
      %40 = dma.hbm_to_vmem [thread:$0]  %s33, 512, %s35, [#allocation6], 128, 128, 8
    $region9: #{tpu_custom_call.1} parent=1 // pred_fallthru
      _
    // Predicated region
    $region10: #{tpu_custom_call.1} parent=1 // pred_check
      _
    $region11: #{tpu_custom_call.1} parent=1 // pred_check_branch
      %42 = sbr.rel (0) target = $region13
    $region12: #{tpu_custom_call.1} parent=1 // pred_region
      %44 = vsyncadd [#allocation6], 0
      %s45 = sshll.u32 %s2, 4
      %s46 = int_to_ptr.hbm [resolvable:$true] %s45
      %s47 = sshll.u32 [#allocation7], 4
      %s48 = int_to_ptr.vmem [resolvable:$true] %s47
      %53 = dma.hbm_to_vmem [thread:$0]  %s46, 512, %s48, [#allocation6], 128, 128, 8
    $region13: #{tpu_custom_call.1} parent=1 // pred_fallthru
      _
    // Predicated region
    $region14: #{tpu_custom_call.1} parent=1 // pred_check
      _
    $region15: #{tpu_custom_call.1} parent=1 // pred_check_branch
      %55 = sbr.rel (0) target = $region17
    $region16: #{tpu_custom_call.1} parent=1 // pred_region
      _
    $region17: #{tpu_custom_call.1} parent=1 // pred_fallthru
      _
    // Predicated region
    $region18: #{tpu_custom_call.1} parent=1 // pred_check
      _
    $region19: #{tpu_custom_call.1} parent=1 // pred_check_branch
      %57 = sbr.rel (0) target = $region21
    $region20: #{tpu_custom_call.1} parent=1 // pred_region
      %59 = vsyncadd [#allocation9], 0
      %s60 = sshll.u32 %s4, 4
      %s61 = int_to_ptr.hbm [resolvable:$true] %s60
      %s62 = sshll.u32 [#allocation8], 4
      %s63 = int_to_ptr.vmem [resolvable:$true] %s62
      %68 = dma.hbm_to_vmem [thread:$0]  %s61, 512, %s63, [#allocation9], 128, 128, 8
    $region21: #{tpu_custom_call.1} parent=1 // pred_fallthru
      _
    // Predicated region
    $region22: #{tpu_custom_call.1} parent=1 // pred_check
      _
    $region23: #{tpu_custom_call.1} parent=1 // pred_check_branch
      %70 = sbr.rel (0) target = $region25
    $region24: #{tpu_custom_call.1} parent=1 // pred_region
      _
    $region25: #{tpu_custom_call.1} parent=1 // pred_fallthru
      _
    // Predicated region
    $region26: #{tpu_custom_call.1} parent=1 // pred_check
      _
    $region27: #{tpu_custom_call.1} parent=1 // pred_check_branch
      %72 = sbr.rel (0) target = $region29
    $region28: #{tpu_custom_call.1} parent=1 // pred_region
      %74 = dma.done [#allocation3], 256
    $region29: #{tpu_custom_call.1} parent=1 // pred_fallthru
      _
    // Predicated region
    $region30: #{tpu_custom_call.1} parent=1 // pred_check
      _
    $region31: #{tpu_custom_call.1} parent=1 // pred_check_branch
      %76 = sbr.rel (0) target = $region33
    $region32: #{tpu_custom_call.1} parent=1 // pred_region
      %78 = dma.done [#allocation6], 512
    $region33: #{tpu_custom_call.1} parent=1 // pred_fallthru
      _
    // Predicated region
    $region34: #{tpu_custom_call.1} parent=1 // pred_check
      _
    $region35: #{tpu_custom_call.1} parent=1 // pred_check_branch
      %80 = sbr.rel (0) target = $region37
    $region36: #{tpu_custom_call.1} parent=1 // pred_region
      %82 = dma.done [#allocation6], 512
    $region37: #{tpu_custom_call.1} parent=1 // pred_fallthru
      _
    // Predicated region
    $region38: #{tpu_custom_call.1} parent=1 // pred_check
      _
    $region39: #{tpu_custom_call.1} parent=1 // pred_check_branch
      %84 = sbr.rel (0) target = $region41
    $region40: #{tpu_custom_call.1} parent=1 // pred_region
      %86 = dma.done [#allocation9], 512
    $region41: #{tpu_custom_call.1} parent=1 // pred_fallthru
      _
    %v87 = vld [vmem:[#allocation2] sm:$0xff]
    %v88 = vld [vmem:[#allocation2 + $0x8] sm:$0xff]
    %v89 = vld [vmem:[#allocation5] sm:$0xff]
    %v90 = vld [vmem:[#allocation5 + $0x8] sm:$0xff]
    %v91 = vld [vmem:[#allocation5 + $0x10] sm:$0xff]
    %v92 = vld [vmem:[#allocation5 + $0x18] sm:$0x3]
    %v93 = vld [vmem:[%s3] sm:$0x1]
    %v95 = vperm.slane %v93, 0
    %vm97 = vcmask 211968
    %v99 = vsel %vm97, %v87, 0
    %v102 = vsel %vm97, %v88, 0
    %vm104 = vcmask 1041408
    %v106 = vsel %vm104, %v92, 0
    %108 = vmatpush.msra.mxu0 0.0
    %109 = vmatpush.msra.mxu0 0.0
    %110 = vmatpush.msra.mxu0 0.0
    %111 = vmatpush.msra.mxu0 0.0
    %112 = vmatpush.msra.mxu0 0.0
    %113 = vmatpush.msra.mxu0 0.0
    %114 = vmatpush.msra.mxu0 0.0
    %115 = vmatpush.msra.mxu0 0.0
    %116 = vmatpush.msra.mxu0 0.0
    %117 = vmatpush.msra.mxu0 0.0
    %118 = vmatpush.msra.mxu0 0.0
    %119 = vmatpush.msra.mxu0 0.0
    %120 = vmatpush.msra.mxu0 %v106
    %121 = vmatpush.msra.mxu0 %v91
    %122 = vmatpush.msra.mxu0 %v90
    %123 = vmatpush.msra.mxu0 %v89
    %124 = vmatmul.f32.gmra.mxu0 %v99
    %v125 = vpop.f32.mrf.mxu0
    %v126 = vadd.f32 %v95, %v125
    %127 = vmatmul.f32.gmra.mxu0 %v102
    %v128 = vpop.f32.mrf.mxu0
    %v129 = vadd.f32 %v95, %v128
    %130 = vdwg.mxu0
    %v131 = vld [vmem:[#allocation7] sm:$0xff]
    %v132 = vld [vmem:[#allocation7 + $0x8] sm:$0xff]
    %v133 = vld [vmem:[#allocation7 + $0x10] sm:$0xff]
    %v134 = vld [vmem:[#allocation7 + $0x18] sm:$0xff]
    %vm135 = vcmask 261120
    %v137 = vsel %vm135, 0.0, 0
    %139 = vmatpush.msra.mxu0 0.0
    %140 = vmatpush.msra.mxu0 0.0
    %141 = vmatpush.msra.mxu0 0.0
    %142 = vmatpush.msra.mxu0 0.0
    %143 = vmatpush.msra.mxu0 0.0
    %144 = vmatpush.msra.mxu0 0.0
    %145 = vmatpush.msra.mxu0 0.0
    %146 = vmatpush.msra.mxu0 0.0
    %147 = vmatpush.msra.mxu0 0.0
    %148 = vmatpush.msra.mxu0 0.0
    %149 = vmatpush.msra.mxu0 0.0
    %150 = vmatpush.msra.mxu0 0.0
    %151 = vmatpush.msra.mxu0 %v134
    %152 = vmatpush.msra.mxu0 %v133
    %153 = vmatpush.msra.mxu0 %v132
    %154 = vmatpush.msra.mxu0 %v131
    %155 = vmatmul.f32.gmra.mxu0 %v137
    %v156 = vpop.f32.mrf.mxu0
    %v157 = vadd.f32 0.0, %v156
    %158 = vdwg.mxu0
    %v159 = vadd.f32 %v126, %v157
    %v160 = vxor.u32 %v159, 2147483648
    %v161 = vmul.f32 %v160, 1.442695
    %v162 = vpow.pop %v161
    %v163 = vadd.f32 %v162, 1.0
    %v164 = vrcp.pop %v163
    %v165 = vmul.f32 %v163, %v164
    %v166 = vsub.f32 1.0, %v165
    %v167 = vmul.f32 %v164, %v166
    %v168 = vadd.f32 %v164, %v167
    %vm169 = vweird.f32 %v163
    %vm170 = vweird.f32 %v164
    %vm171 = vmor %vm169, %vm170
    %v172 = vsel %vm171, %v164, %v168
    %v173 = vand.u32 2147483647, %v163
    %vm174 = vcmp.eq.f32.partialorder %v173, 8.507059e+37
    %v175 = vand.u32 %v163, 2147483648
    %v176 = vor.u32 1.1754944e-38, %v175
    %v177 = vsel %vm174, %v176, %v172
    %v178 = vmul.f32 1.0, %v177
    %v179 = vtanh.pop %v159
    %v180 = vmul.f32 %v178, 0.0
    %182 = vrot.lane.b32.xlu0 %v179, 64
    %v183 = vpop.permute.xlu0 %182
    %v185 = vmul.f32 %v178, %v183
    %187 = vrot.lane.b32.xlu0 %v185, 32
    %v188 = vpop.permute.xlu0 %187
    %v190 = vadd.f32 %v180, %v188
    %v191 = vtanh.pop %v190
    %193 = vrot.lane.b32.xlu0 %v191, 64
    %v194 = vpop.permute.xlu0 %193
    %v196 = vmul.f32 %v178, %v194
    %198 = vrot.lane.b32.xlu0 %v196, 32
    %v199 = vpop.permute.xlu0 %198
    %v200 = vsel %vm135, %v199, 0
    %202 = vmatpush.msra.mxu0 0.0
    %203 = vmatpush.msra.mxu0 0.0
    %204 = vmatpush.msra.mxu0 0.0
    %205 = vmatpush.msra.mxu0 0.0
    %206 = vmatpush.msra.mxu0 0.0
    %207 = vmatpush.msra.mxu0 0.0
    %208 = vmatpush.msra.mxu0 0.0
    %209 = vmatpush.msra.mxu0 0.0
    %210 = vmatpush.msra.mxu0 0.0
    %211 = vmatpush.msra.mxu0 0.0
    %212 = vmatpush.msra.mxu0 0.0
    %213 = vmatpush.msra.mxu0 0.0
    %214 = vmatpush.msra.mxu0 %v134
    %215 = vmatpush.msra.mxu0 %v133
    %216 = vmatpush.msra.mxu0 %v132
    %217 = vmatpush.msra.mxu0 %v131
    %218 = vmatmul.f32.gmra.mxu0 %v200
    %v219 = vpop.f32.mrf.mxu0
    %v220 = vadd.f32 0.0, %v219
    %221 = vdwg.mxu0
    %v223 = vrot.slane %v220, 6
    %v225 = vadd.f32 %v126, %v223
    %v226 = vxor.u32 %v225, 2147483648
    %v227 = vmul.f32 %v226, 1.442695
    %v228 = vpow.pop %v227
    %v229 = vadd.f32 %v228, 1.0
    %v230 = vrcp.pop %v229
    %v231 = vmul.f32 %v229, %v230
    %v232 = vsub.f32 1.0, %v231
    %v233 = vmul.f32 %v230, %v232
    %v234 = vadd.f32 %v230, %v233
    %vm235 = vweird.f32 %v229
    %vm236 = vweird.f32 %v230
    %vm237 = vmor %vm235, %vm236
    %v238 = vsel %vm237, %v230, %v234
    %v239 = vand.u32 2147483647, %v229
    %vm240 = vcmp.eq.f32.partialorder %v239, 8.507059e+37
    %v241 = vand.u32 %v229, 2147483648
    %v242 = vor.u32 1.1754944e-38, %v241
    %v243 = vsel %vm240, %v242, %v238
    %v244 = vmul.f32 1.0, %v243
    %v245 = vtanh.pop %v225
    %v247 = vrot.slane %v190, 6
    %v249 = vmul.f32 %v244, %v247
    %251 = vrot.lane.b32.xlu0 %v245, 64
    %v252 = vpop.permute.xlu0 %251
    %v254 = vmul.f32 %v244, %v252
    %256 = vrot.lane.b32.xlu0 %v254, 32
    %v257 = vpop.permute.xlu0 %256
    %v259 = vadd.f32 %v249, %v257
    %v260 = vtanh.pop %v259
    %262 = vrot.lane.b32.xlu0 %v260, 64
    %v263 = vpop.permute.xlu0 %262
    %v265 = vmul.f32 %v244, %v263
    %v267 = vrot.slane %v265, 2
    %268 = vrot.lane.b32.xlu0 %v267, 32
    %v269 = vpop.permute.xlu0 %268
    %v270 = vsel %vm135, %v269, 0
    %272 = vmatpush.msra.mxu0 0.0
    %273 = vmatpush.msra.mxu0 0.0
    %274 = vmatpush.msra.mxu0 0.0
    %275 = vmatpush.msra.mxu0 0.0
    %276 = vmatpush.msra.mxu0 0.0
    %277 = vmatpush.msra.mxu0 0.0
    %278 = vmatpush.msra.mxu0 0.0
    %279 = vmatpush.msra.mxu0 0.0
    %280 = vmatpush.msra.mxu0 0.0
    %281 = vmatpush.msra.mxu0 0.0
    %282 = vmatpush.msra.mxu0 0.0
    %283 = vmatpush.msra.mxu0 0.0
    %284 = vmatpush.msra.mxu0 %v134
    %285 = vmatpush.msra.mxu0 %v133
    %286 = vmatpush.msra.mxu0 %v132
    %287 = vmatpush.msra.mxu0 %v131
    %288 = vmatmul.f32.gmra.mxu0 %v270
    %v289 = vpop.f32.mrf.mxu0
    %v290 = vadd.f32 0.0, %v289
    %291 = vdwg.mxu0
    %v293 = vrot.slane %v290, 4
    %v295 = vadd.f32 %v126, %v293
    %v296 = vxor.u32 %v295, 2147483648
    %v297 = vmul.f32 %v296, 1.442695
    %v298 = vpow.pop %v297
    %v299 = vadd.f32 %v298, 1.0
    %v300 = vrcp.pop %v299
    %v301 = vmul.f32 %v299, %v300
    %v302 = vsub.f32 1.0, %v301
    %v303 = vmul.f32 %v300, %v302
    %v304 = vadd.f32 %v300, %v303
    %vm305 = vweird.f32 %v299
    %vm306 = vweird.f32 %v300
    %vm307 = vmor %vm305, %vm306
    %v308 = vsel %vm307, %v300, %v304
    %v309 = vand.u32 2147483647, %v299
    %vm310 = vcmp.eq.f32.partialorder %v309, 8.507059e+37
    %v311 = vand.u32 %v299, 2147483648
    %v312 = vor.u32 1.1754944e-38, %v311
    %v313 = vsel %vm310, %v312, %v308
    %v314 = vmul.f32 1.0, %v313
    %v315 = vtanh.pop %v295
    %v317 = vrot.slane %v259, 6
    %v319 = vmul.f32 %v314, %v317
    %321 = vrot.lane.b32.xlu0 %v315, 64
    %v322 = vpop.permute.xlu0 %321
    %v324 = vmul.f32 %v314, %v322
    %326 = vrot.lane.b32.xlu0 %v324, 32
    %v327 = vpop.permute.xlu0 %326
    %v329 = vadd.f32 %v319, %v327
    %v330 = vtanh.pop %v329
    %332 = vrot.lane.b32.xlu0 %v330, 64
    %v333 = vpop.permute.xlu0 %332
    %v335 = vmul.f32 %v314, %v333
    %v337 = vrot.slane %v335, 4
    %338 = vrot.lane.b32.xlu0 %v337, 32
    %v339 = vpop.permute.xlu0 %338
    %v340 = vsel %vm135, %v339, 0
    %342 = vmatpush.msra.mxu0 0.0
    %343 = vmatpush.msra.mxu0 0.0
    %344 = vmatpush.msra.mxu0 0.0
    %345 = vmatpush.msra.mxu0 0.0
    %346 = vmatpush.msra.mxu0 0.0
    %347 = vmatpush.msra.mxu0 0.0
    %348 = vmatpush.msra.mxu0 0.0
    %349 = vmatpush.msra.mxu0 0.0
    %350 = vmatpush.msra.mxu0 0.0
    %351 = vmatpush.msra.mxu0 0.0
    %352 = vmatpush.msra.mxu0 0.0
    %353 = vmatpush.msra.mxu0 0.0
    %354 = vmatpush.msra.mxu0 %v134
    %355 = vmatpush.msra.mxu0 %v133
    %356 = vmatpush.msra.mxu0 %v132
    %357 = vmatpush.msra.mxu0 %v131
    %358 = vmatmul.f32.gmra.mxu0 %v340
    %v359 = vpop.f32.mrf.mxu0
    %v360 = vadd.f32 0.0, %v359
    %361 = vdwg.mxu0
    %v363 = vrot.slane %v360, 2
    %v365 = vadd.f32 %v126, %v363
    %v366 = vxor.u32 %v365, 2147483648
    %v367 = vmul.f32 %v366, 1.442695
    %v368 = vpow.pop %v367
    %v369 = vadd.f32 %v368, 1.0
    %v370 = vrcp.pop %v369
    %v371 = vmul.f32 %v369, %v370
    %v372 = vsub.f32 1.0, %v371
    %v373 = vmul.f32 %v370, %v372
    %v374 = vadd.f32 %v370, %v373
    %vm375 = vweird.f32 %v369
    %vm376 = vweird.f32 %v370
    %vm377 = vmor %vm375, %vm376
    %v378 = vsel %vm377, %v370, %v374
    %v379 = vand.u32 2147483647, %v369
    %vm380 = vcmp.eq.f32.partialorder %v379, 8.507059e+37
    %v381 = vand.u32 %v369, 2147483648
    %v382 = vor.u32 1.1754944e-38, %v381
    %v383 = vsel %vm380, %v382, %v378
    %v384 = vmul.f32 1.0, %v383
    %v385 = vtanh.pop %v365
    %v387 = vrot.slane %v329, 6
    %v389 = vmul.f32 %v384, %v387
    %391 = vrot.lane.b32.xlu0 %v385, 64
    %v392 = vpop.permute.xlu0 %391
    %v394 = vmul.f32 %v384, %v392
    %396 = vrot.lane.b32.xlu0 %v394, 32
    %v397 = vpop.permute.xlu0 %396
    %v399 = vadd.f32 %v389, %v397
    %v400 = vtanh.pop %v399
    %402 = vrot.lane.b32.xlu0 %v400, 64
    %v403 = vpop.permute.xlu0 %402
    %v405 = vmul.f32 %v384, %v403
    %v407 = vrot.slane %v405, 6
    %408 = vrot.lane.b32.xlu0 %v407, 32
    %v409 = vpop.permute.xlu0 %408
    %v410 = vsel %vm135, %v409, 0
    %412 = vmatpush.msra.mxu0 0.0
    %413 = vmatpush.msra.mxu0 0.0
    %414 = vmatpush.msra.mxu0 0.0
    %415 = vmatpush.msra.mxu0 0.0
    %416 = vmatpush.msra.mxu0 0.0
    %417 = vmatpush.msra.mxu0 0.0
    %418 = vmatpush.msra.mxu0 0.0
    %419 = vmatpush.msra.mxu0 0.0
    %420 = vmatpush.msra.mxu0 0.0
    %421 = vmatpush.msra.mxu0 0.0
    %422 = vmatpush.msra.mxu0 0.0
    %423 = vmatpush.msra.mxu0 0.0
    %424 = vmatpush.msra.mxu0 %v134
    %425 = vmatpush.msra.mxu0 %v133
    %426 = vmatpush.msra.mxu0 %v132
    %427 = vmatpush.msra.mxu0 %v131
    %428 = vmatmul.f32.gmra.mxu0 %v410
    %v429 = vpop.f32.mrf.mxu0
    %v430 = vadd.f32 0.0, %v429
    %431 = vdwg.mxu0
    %v432 = vadd.f32 %v129, %v430
    %v433 = vxor.u32 %v432, 2147483648
    %v434 = vmul.f32 %v433, 1.442695
    %v435 = vpow.pop %v434
    %v436 = vadd.f32 %v435, 1.0
    %v437 = vrcp.pop %v436
    %v438 = vmul.f32 %v436, %v437
    %v439 = vsub.f32 1.0, %v438
    %v440 = vmul.f32 %v437, %v439
    %v441 = vadd.f32 %v437, %v440
    %vm442 = vweird.f32 %v436
    %vm443 = vweird.f32 %v437
    %vm444 = vmor %vm442, %vm443
    %v445 = vsel %vm444, %v437, %v441
    %v446 = vand.u32 2147483647, %v436
    %vm447 = vcmp.eq.f32.partialorder %v446, 8.507059e+37
    %v448 = vand.u32 %v436, 2147483648
    %v449 = vor.u32 1.1754944e-38, %v448
    %v450 = vsel %vm447, %v449, %v445
    %v451 = vmul.f32 1.0, %v450
    %v452 = vtanh.pop %v432
    %v454 = vrot.slane %v399, 6
    %v456 = vmul.f32 %v451, %v454
    %458 = vrot.lane.b32.xlu0 %v452, 64
    %v459 = vpop.permute.xlu0 %458
    %v461 = vmul.f32 %v451, %v459
    %463 = vrot.lane.b32.xlu0 %v461, 32
    %v464 = vpop.permute.xlu0 %463
    %v466 = vadd.f32 %v456, %v464
    %v467 = vtanh.pop %v466
    %469 = vrot.lane.b32.xlu0 %v467, 64
    %v470 = vpop.permute.xlu0 %469
    %v472 = vmul.f32 %v451, %v470
    %474 = vrot.lane.b32.xlu0 %v472, 32
    %v475 = vpop.permute.xlu0 %474
    %v476 = vsel %vm135, %v475, 0
    %478 = vmatpush.msra.mxu0 0.0
    %479 = vmatpush.msra.mxu0 0.0
    %480 = vmatpush.msra.mxu0 0.0
    %481 = vmatpush.msra.mxu0 0.0
    %482 = vmatpush.msra.mxu0 0.0
    %483 = vmatpush.msra.mxu0 0.0
    %484 = vmatpush.msra.mxu0 0.0
    %485 = vmatpush.msra.mxu0 0.0
    %486 = vmatpush.msra.mxu0 0.0
    %487 = vmatpush.msra.mxu0 0.0
    %488 = vmatpush.msra.mxu0 0.0
    %489 = vmatpush.msra.mxu0 0.0
    %490 = vmatpush.msra.mxu0 %v134
    %491 = vmatpush.msra.mxu0 %v133
    %492 = vmatpush.msra.mxu0 %v132
    %493 = vmatpush.msra.mxu0 %v131
    %494 = vmatmul.f32.gmra.mxu0 %v476
    %v495 = vpop.f32.mrf.mxu0
    %v496 = vadd.f32 0.0, %v495
    %497 = vdwg.mxu0
    %v499 = vrot.slane %v496, 6
    %v501 = vadd.f32 %v129, %v499
    %v502 = vxor.u32 %v501, 2147483648
    %v503 = vmul.f32 %v502, 1.442695
    %v504 = vpow.pop %v503
    %v505 = vadd.f32 %v504, 1.0
    %v506 = vrcp.pop %v505
    %v507 = vmul.f32 %v505, %v506
    %v508 = vsub.f32 1.0, %v507
    %v509 = vmul.f32 %v506, %v508
    %v510 = vadd.f32 %v506, %v509
    %vm511 = vweird.f32 %v505
    %vm512 = vweird.f32 %v506
    %vm513 = vmor %vm511, %vm512
    %v514 = vsel %vm513, %v506, %v510
    %v515 = vand.u32 2147483647, %v505
    %vm516 = vcmp.eq.f32.partialorder %v515, 8.507059e+37
    %v517 = vand.u32 %v505, 2147483648
    %v518 = vor.u32 1.1754944e-38, %v517
    %v519 = vsel %vm516, %v518, %v514
    %v520 = vmul.f32 1.0, %v519
    %v521 = vtanh.pop %v501
    %v523 = vrot.slane %v466, 6
    %v525 = vmul.f32 %v520, %v523
    %527 = vrot.lane.b32.xlu0 %v521, 64
    %v528 = vpop.permute.xlu0 %527
    %v530 = vmul.f32 %v520, %v528
    %532 = vrot.lane.b32.xlu0 %v530, 32
    %v533 = vpop.permute.xlu0 %532
    %v535 = vadd.f32 %v525, %v533
    %v536 = vtanh.pop %v535
    %538 = vrot.lane.b32.xlu0 %v536, 64
    %v539 = vpop.permute.xlu0 %538
    %v541 = vmul.f32 %v520, %v539
    %v543 = vrot.slane %v541, 2
    %544 = vrot.lane.b32.xlu0 %v543, 32
    %v545 = vpop.permute.xlu0 %544
    %v546 = vsel %vm135, %v545, 0
    %548 = vmatpush.msra.mxu0 0.0
    %549 = vmatpush.msra.mxu0 0.0
    %550 = vmatpush.msra.mxu0 0.0
    %551 = vmatpush.msra.mxu0 0.0
    %552 = vmatpush.msra.mxu0 0.0
    %553 = vmatpush.msra.mxu0 0.0
    %554 = vmatpush.msra.mxu0 0.0
    %555 = vmatpush.msra.mxu0 0.0
    %556 = vmatpush.msra.mxu0 0.0
    %557 = vmatpush.msra.mxu0 0.0
    %558 = vmatpush.msra.mxu0 0.0
    %559 = vmatpush.msra.mxu0 0.0
    %560 = vmatpush.msra.mxu0 %v134
    %561 = vmatpush.msra.mxu0 %v133
    %562 = vmatpush.msra.mxu0 %v132
    %563 = vmatpush.msra.mxu0 %v131
    %564 = vmatmul.f32.gmra.mxu0 %v546
    %v565 = vpop.f32.mrf.mxu0
    %v566 = vadd.f32 0.0, %v565
    %567 = vdwg.mxu0
    %v569 = vrot.slane %v566, 4
    %v571 = vadd.f32 %v129, %v569
    %v572 = vxor.u32 %v571, 2147483648
    %v573 = vmul.f32 %v572, 1.442695
    %v574 = vpow.pop %v573
    %v575 = vadd.f32 %v574, 1.0
    %v576 = vrcp.pop %v575
    %v577 = vmul.f32 %v575, %v576
    %v578 = vsub.f32 1.0, %v577
    %v579 = vmul.f32 %v576, %v578
    %v580 = vadd.f32 %v576, %v579
    %vm581 = vweird.f32 %v575
    %vm582 = vweird.f32 %v576
    %vm583 = vmor %vm581, %vm582
    %v584 = vsel %vm583, %v576, %v580
    %v585 = vand.u32 2147483647, %v575
    %vm586 = vcmp.eq.f32.partialorder %v585, 8.507059e+37
    %v587 = vand.u32 %v575, 2147483648
    %v588 = vor.u32 1.1754944e-38, %v587
    %v589 = vsel %vm586, %v588, %v584
    %v590 = vmul.f32 1.0, %v589
    %v591 = vtanh.pop %v571
    %v593 = vrot.slane %v535, 6
    %v595 = vmul.f32 %v590, %v593
    %597 = vrot.lane.b32.xlu0 %v591, 64
    %v598 = vpop.permute.xlu0 %597
    %v600 = vmul.f32 %v590, %v598
    %602 = vrot.lane.b32.xlu0 %v600, 32
    %v603 = vpop.permute.xlu0 %602
    %v605 = vadd.f32 %v595, %v603
    %v606 = vtanh.pop %v605
    %608 = vrot.lane.b32.xlu0 %v606, 64
    %v609 = vpop.permute.xlu0 %608
    %v611 = vmul.f32 %v590, %v609
    %v613 = vrot.slane %v611, 4
    %614 = vrot.lane.b32.xlu0 %v613, 32
    %v615 = vpop.permute.xlu0 %614
    %v616 = vsel %vm135, %v615, 0
    %618 = vmatpush.msra.mxu0 0.0
    %619 = vmatpush.msra.mxu0 0.0
    %620 = vmatpush.msra.mxu0 0.0
    %621 = vmatpush.msra.mxu0 0.0
    %622 = vmatpush.msra.mxu0 0.0
    %623 = vmatpush.msra.mxu0 0.0
    %624 = vmatpush.msra.mxu0 0.0
    %625 = vmatpush.msra.mxu0 0.0
    %626 = vmatpush.msra.mxu0 0.0
    %627 = vmatpush.msra.mxu0 0.0
    %628 = vmatpush.msra.mxu0 0.0
    %629 = vmatpush.msra.mxu0 0.0
    %630 = vmatpush.msra.mxu0 %v134
    %631 = vmatpush.msra.mxu0 %v133
    %632 = vmatpush.msra.mxu0 %v132
    %633 = vmatpush.msra.mxu0 %v131
    %634 = vmatmul.f32.gmra.mxu0 %v616
    %v635 = vpop.f32.mrf.mxu0
    %v636 = vadd.f32 0.0, %v635
    %637 = vdwg.mxu0
    %v639 = vrot.slane %v636, 2
    %v641 = vadd.f32 %v129, %v639
    %v642 = vxor.u32 %v641, 2147483648
    %v643 = vmul.f32 %v642, 1.442695
    %v644 = vpow.pop %v643
    %v645 = vadd.f32 %v644, 1.0
    %v646 = vrcp.pop %v645
    %v647 = vmul.f32 %v645, %v646
    %v648 = vsub.f32 1.0, %v647
    %v649 = vmul.f32 %v646, %v648
    %v650 = vadd.f32 %v646, %v649
    %vm651 = vweird.f32 %v645
    %vm652 = vweird.f32 %v646
    %vm653 = vmor %vm651, %vm652
    %v654 = vsel %vm653, %v646, %v650
    %v655 = vand.u32 2147483647, %v645
    %vm656 = vcmp.eq.f32.partialorder %v655, 8.507059e+37
    %v657 = vand.u32 %v645, 2147483648
    %v658 = vor.u32 1.1754944e-38, %v657
    %v659 = vsel %vm656, %v658, %v654
    %v660 = vmul.f32 1.0, %v659
    %v661 = vtanh.pop %v641
    %v663 = vrot.slane %v605, 6
    %v665 = vmul.f32 %v660, %v663
    %667 = vrot.lane.b32.xlu0 %v661, 64
    %v668 = vpop.permute.xlu0 %667
    %v670 = vmul.f32 %v660, %v668
    %672 = vrot.lane.b32.xlu0 %v670, 32
    %v673 = vpop.permute.xlu0 %672
    %v675 = vadd.f32 %v665, %v673
    %v676 = vtanh.pop %v675
    %678 = vrot.lane.b32.xlu0 %v676, 64
    %v679 = vpop.permute.xlu0 %678
    %v681 = vmul.f32 %v660, %v679
    %v682 = vld [vmem:[#allocation8] sm:$0xff]
    %v683 = vld [vmem:[#allocation8 + $0x8] sm:$0xff]
    %v684 = vld [vmem:[#allocation8 + $0x10] sm:$0xff]
    %v685 = vld [vmem:[#allocation8 + $0x18] sm:$0xff]
    %v686 = vld [vmem:[%s5] sm:$0x1]
    %v688 = vperm.slane %v686, 0
    %v691 = vrot.slane %v681, 6
    %692 = vrot.lane.b32.xlu0 %v691, 32
    %v693 = vpop.permute.xlu0 %692
    %v694 = vsel %vm135, %v693, 0
    %696 = vmatpush.msra.mxu0 0.0
    %697 = vmatpush.msra.mxu0 0.0
    %698 = vmatpush.msra.mxu0 0.0
    %699 = vmatpush.msra.mxu0 0.0
    %700 = vmatpush.msra.mxu0 0.0
    %701 = vmatpush.msra.mxu0 0.0
    %702 = vmatpush.msra.mxu0 0.0
    %703 = vmatpush.msra.mxu0 0.0
    %704 = vmatpush.msra.mxu0 0.0
    %705 = vmatpush.msra.mxu0 0.0
    %706 = vmatpush.msra.mxu0 0.0
    %707 = vmatpush.msra.mxu0 0.0
    %708 = vmatpush.msra.mxu0 %v685
    %709 = vmatpush.msra.mxu0 %v684
    %710 = vmatpush.msra.mxu0 %v683
    %711 = vmatpush.msra.mxu0 %v682
    %712 = vmatmul.f32.gmra.mxu0 %v694
    %v713 = vpop.f32.mrf.mxu0
    %v714 = vadd.f32 %v688, %v713
    %715 = vdwg.mxu0
    %vm716 = vcmask 205824
    %717 = vst.msk [vmem:[#allocation10] sm:$0x3] %vm716, %v714
    // Predicated region
    $region42: #{tpu_custom_call.1} parent=1 // pred_check
      _
    $region43: #{tpu_custom_call.1} parent=1 // pred_check_branch
      %719 = sbr.rel (0) target = $region45
    $region44: #{tpu_custom_call.1} parent=1 // pred_region
      %721 = vsyncadd [#allocation4], 0
      %s723 = sshll.u32 [#allocation10], 4
      %s724 = int_to_ptr.vmem [resolvable:$true] %s723
      %s725 = sshll.u32 %s6, 4
      %s726 = int_to_ptr.hbm [resolvable:$true] %s725
      %728 = dma.vmem_to_hbm [thread:$0]  %s724, 32, %s726, [#allocation4]
    $region45: #{tpu_custom_call.1} parent=1 // pred_fallthru
      _
    // Predicated region
    $region46: #{tpu_custom_call.1} parent=1 // pred_check
      _
    $region47: #{tpu_custom_call.1} parent=1 // pred_check_branch
      %730 = sbr.rel (0) target = $region49
    $region48: #{tpu_custom_call.1} parent=1 // pred_region
      %732 = dma.done [#allocation4], 32
    $region49: #{tpu_custom_call.1} parent=1 // pred_fallthru
      _
    %733 = vsyncpa [#allocation3], 1
    %734 = vsyncpa [#allocation6], 1
    %735 = vsyncpa [#allocation9], 1
    %736 = vsyncpa [#allocation4], 1

</llo_original>
